<compile_context>
chip_gen: v7x
topology: tpu7x:2x2x1
jax: 0.10.0
libtpu: 0.0.40
codegen_flags: <defaults>
</compile_context>

<pallas_src>
import functools
import math

import jax
import jax.numpy as jnp
from jax.experimental import pallas as pl
from jax.experimental.pallas import tpu as pltpu


# ----------------------------- configuration ---------------------------------
class cfg:
    use_ff = False              # -> embed_dim = 3 + latent_dim
    latent_dim = 32
    hidden_dim = 32
    supervision = "occupancy"   # 'sdf' -> output_bias = 0.0, else 0.5


NUM_NODES = 4                       # stored by MLP.__init__, unused in forward
EMBED_DIM = 3 + cfg.latent_dim      # 35
HIDDEN_DIM = cfg.hidden_dim         # 32
NUM_LAYERS = 4
OUTPUT_BIAS = 0.0 if cfg.supervision == "sdf" else 0.5

_MAX_TILE_M = 2048                  # rows per grid step (multiple of 128)


# ------------------------------ Pallas kernel ---------------------------------
def _mlp_fused_kernel(*refs, num_hidden):
    """refs = (xT, w1T, b1, ..., w_nhT, b_nh, w_out, b_out, oT).

    Transposed ("rows on lanes") fused MLP for one row tile:
        hT(D, TM) = relu(W_i^T @ hT + b_i)        i = 1..num_hidden
        yT(1, TM) = sum_d(w_out[d] * hT[d, :]) + (b_out + OUTPUT_BIAS)
    Activations stay in vregs/VMEM; hidden matmuls run on the MXU in bf16 with
    f32 accumulation; biases / ReLU / output layer in f32 with full lane
    utilization; the output store is lane-dense (1, TM).
    """
    xT_ref = refs[0]
    o_ref = refs[-1]
    wb = refs[1:-1]

    h = xT_ref[...]                                           # (E, TM) f32
    for li in range(num_hidden):
        wT = wb[2 * li][...]                                  # (D, K) bf16
        b = wb[2 * li + 1][...]                               # (D, 1) f32
        h = jnp.dot(wT, h.astype(jnp.bfloat16),
                    preferred_element_type=jnp.float32) + b
        h = jnp.maximum(h, 0.0)                               # ReLU in f32
    w_out = wb[2 * num_hidden][...]                           # (D, 1) f32
    b_out = wb[2 * num_hidden + 1][...]                       # (1, 1) f32 (incl OUTPUT_BIAS)
    # N=1 output layer as broadcast-mul + sublane reduce (XLU), not an MXU matmul.
    y = jnp.sum(h * w_out, axis=0, keepdims=True) + b_out     # (1, TM)
    o_ref[...] = y.astype(o_ref.dtype)


def _choose_tile_m(m):
    """Lane-dense row tile: multiple of 128, big enough to amortize the
    ~0.35 us per-grid-step overhead, and >= 2 grid steps when there are enough
    rows so both v7x TensorCores get work (no effect on v5e/v6e)."""
    m128 = pl.cdiv(m, 128) * 128
    if m128 <= 256:
        return int(m128)                       # too few rows to split usefully
    half = pl.cdiv(m128, 2 * 128) * 128        # ~half the rows, lane aligned
    return int(min(_MAX_TILE_M, half))


def _mlp_pallas(xT, prepared, *, tile_m):
    """xT: (E, M_pad) f32 with M_pad a multiple of tile_m. Returns (1, M_pad) f32."""
    E, m_pad = xT.shape
    num_hidden = len(prepared["hidden"])

    inputs = [xT]
    in_specs = [pl.BlockSpec((E, tile_m), lambda i: (0, i))]
    for wT, b in list(prepared["hidden"]) + [prepared["out"]]:
        inputs += [wT, b]
        in_specs += [
            pl.BlockSpec(wT.shape, lambda i: (0, 0)),   # weights stay VMEM-resident
            pl.BlockSpec(b.shape, lambda i: (0, 0)),
        ]

    return pl.pallas_call(
        functools.partial(_mlp_fused_kernel, num_hidden=num_hidden),
        out_shape=jax.ShapeDtypeStruct((1, m_pad), jnp.float32),
        grid=(m_pad // tile_m,),
        in_specs=in_specs,
        out_specs=pl.BlockSpec((1, tile_m), lambda i: (0, i)),   # lane-dense store
        compiler_params=pltpu.CompilerParams(
            dimension_semantics=("parallel",)),          # row tiles -> both TCs on v7x
    )(*inputs)


@jax.jit
def mlp_forward(prepared, x):
    """MLP.forward: x (..., embed_dim) -> (..., 1)."""
    E = x.shape[-1]
    lead = x.shape[:-1]
    x2 = x.reshape(-1, E).astype(jnp.float32)
    M = x2.shape[0]
    tile_m = _choose_tile_m(M)
    m_pad = pl.cdiv(M, tile_m) * tile_m
    if m_pad != M:                                        # pad rows to a full tile
        x2 = jnp.pad(x2, ((0, m_pad - M), (0, 0)))
    xT = x2.T                                             # (E, M_pad): layout plumbing only
    yT = _mlp_pallas(xT, prepared, tile_m=tile_m)         # (1, M_pad) lane-dense
    return yT[0, :M].reshape(lead + (1,))


# --------------------------- init & param preparation -------------------------
def init_mlp_params(key, num_nodes=NUM_NODES, embed_dim=EMBED_DIM,
                    dim=HIDDEN_DIM, num_layers=NUM_LAYERS):
    """nn.Linear default init: U(-1/sqrt(fan_in), 1/sqrt(fan_in)) for W and b.
    `num_nodes` is stored by the PyTorch module but unused in forward."""
    del num_nodes

    def lin(k, k_in, k_out):
        bound = 1.0 / math.sqrt(k_in)
        kw, kb = jax.random.split(k)
        w = jax.random.uniform(kw, (k_in, k_out), jnp.float32, -bound, bound)
        b = jax.random.uniform(kb, (k_out,), jnp.float32, -bound, bound)
        return w, b

    keys = jax.random.split(key, num_layers)
    hidden = [lin(keys[0], embed_dim, dim)]
    for i in range(num_layers - 2):
        hidden.append(lin(keys[1 + i], dim, dim))
    out = lin(keys[num_layers - 1], dim, 1)
    return {"hidden": hidden, "out": out}


def prepare_params(params):
    """One-time layout/dtype prep (done once, not per call):
      * hidden weights transposed to (out, in) and cast to bf16 (MXU-native),
      * biases as f32 columns (broadcast along lanes in the kernel),
      * output weight kept as an f32 (D, 1) column (used via sublane reduce),
      * constant OUTPUT_BIAS folded into the output bias.
    """
    hidden = [(w.T.astype(jnp.bfloat16), b.astype(jnp.float32).reshape(-1, 1))
              for w, b in params["hidden"]]
    wo, bo = params["out"]
    out = (wo.astype(jnp.float32).reshape(-1, 1),
           (bo.astype(jnp.float32) + OUTPUT_BIAS).reshape(1, 1))
    return {"hidden": hidden, "out": out}


# ----------------------------- pure-JAX references -----------------------------
def mlp_reference_mixed(params, x):
    """Reference matching the kernel recipe: bf16 hidden matmuls with f32
    accumulation, f32 bias/ReLU, f32 output layer."""
    E = x.shape[-1]
    h = x.reshape(-1, E).astype(jnp.float32)
    for w, b in params["hidden"]:
        h = jnp.dot(h.astype(jnp.bfloat16), w.astype(jnp.bfloat16),
                    preferred_element_type=jnp.float32) + b
        h = jnp.maximum(h, 0.0)
    w, b = params["out"]
    y = jnp.dot(h, w.astype(jnp.float32)) + b + OUTPUT_BIAS
    return y.reshape(x.shape[:-1] + (1,))


def mlp_reference_f32(params, x):
    """Full-f32 reference matching the original PyTorch module."""
    E = x.shape[-1]
    h = x.reshape(-1, E).astype(jnp.float32)
    for w, b in params["hidden"]:
        h = jnp.maximum(jnp.dot(h, w) + b, 0.0)
    w, b = params["out"]
    y = jnp.dot(h, w) + b + OUTPUT_BIAS
    return y.reshape(x.shape[:-1] + (1,))


# ----------------------------------- main --------------------------------------
if __name__ == "__main__":
    key = jax.random.PRNGKey(0)
    k_param, k_x = jax.random.split(key)

    # Small shapes consistent with the module's use inside MultiMLP:
    # embed_dim = 3 + latent_dim = 35, hidden dim = 32, num_layers = 4,
    # x = per-node query points (B, Np, embed_dim).  M = 512 -> tile_m = 256,
    # grid = 2 parallel row tiles (both TCs busy on v7x).
    B, Np = 2, 256
    params = init_mlp_params(k_param)
    prepared = prepare_params(params)
    x = jax.random.normal(k_x, (B, Np, EMBED_DIM), jnp.float32)

    y = mlp_forward(prepared, x)
    y = jax.block_until_ready(y)

    assert y.shape == (B, Np, 1), y.shape
    assert bool(jnp.all(jnp.isfinite(y)))

    err_mixed = float(jnp.max(jnp.abs(y - mlp_reference_mixed(params, x))))
    err_f32 = float(jnp.max(jnp.abs(y - mlp_reference_f32(params, x))))
    assert err_mixed < 2e-3, f"max abs err vs matching-precision ref {err_mixed}"
    assert err_f32 < 1e-1, f"max abs err vs f32 ref {err_f32}"
    print("KERNEL_OK")
</pallas_src>

<mosaic_0001>
module attributes {stable_mosaic.version = 11 : i64} {
  func.func @_mlp_fused_kernel(%arg0: i32, %arg1: memref<35x256xf32, #tpu.memory_space<vmem>>, %arg2: memref<32x35xbf16, #tpu.memory_space<vmem>>, %arg3: memref<32x1xf32, #tpu.memory_space<vmem>>, %arg4: memref<32x32xbf16, #tpu.memory_space<vmem>>, %arg5: memref<32x1xf32, #tpu.memory_space<vmem>>, %arg6: memref<32x32xbf16, #tpu.memory_space<vmem>>, %arg7: memref<32x1xf32, #tpu.memory_space<vmem>>, %arg8: memref<32x1xf32, #tpu.memory_space<vmem>>, %arg9: memref<1x1xf32, #tpu.memory_space<vmem>>, %arg10: memref<1x256xf32, #tpu.memory_space<vmem>>) attributes {dimension_semantics = [#tpu.dimension_semantics<parallel>], iteration_bounds = array<i64: 2>, scalar_prefetch = 0 : i64, scratch_operands = 0 : i64, tpu.core_type = #tpu.core_type<tc>, window_params = [{transform_indices = @transform_0, window_bounds = array<i64: 35, 256>}, {pipeline_mode = #tpu.pipeline_mode<synchronous>, transform_indices = @transform_1, window_bounds = array<i64: 32, 35>}, {pipeline_mode = #tpu.pipeline_mode<synchronous>, transform_indices = @transform_2, window_bounds = array<i64: 32, 1>}, {pipeline_mode = #tpu.pipeline_mode<synchronous>, transform_indices = @transform_3, window_bounds = array<i64: 32, 32>}, {pipeline_mode = #tpu.pipeline_mode<synchronous>, transform_indices = @transform_4, window_bounds = array<i64: 32, 1>}, {pipeline_mode = #tpu.pipeline_mode<synchronous>, transform_indices = @transform_5, window_bounds = array<i64: 32, 32>}, {pipeline_mode = #tpu.pipeline_mode<synchronous>, transform_indices = @transform_6, window_bounds = array<i64: 32, 1>}, {pipeline_mode = #tpu.pipeline_mode<synchronous>, transform_indices = @transform_7, window_bounds = array<i64: 32, 1>}, {pipeline_mode = #tpu.pipeline_mode<synchronous>, transform_indices = @transform_8, window_bounds = array<i64: 1, 1>}, {transform_indices = @transform_9, window_bounds = array<i64: 1, 256>}]} {
    %c0 = arith.constant 0 : index
    %c0_0 = arith.constant 0 : index
    %0 = vector.load %arg1[%c0, %c0_0] : memref<35x256xf32, #tpu.memory_space<vmem>>, vector<35x256xf32>
    %c0_1 = arith.constant 0 : index
    %c0_2 = arith.constant 0 : index
    %1 = vector.load %arg2[%c0_1, %c0_2] : memref<32x35xbf16, #tpu.memory_space<vmem>>, vector<32x35xbf16>
    %c0_3 = arith.constant 0 : index
    %c0_4 = arith.constant 0 : index
    %2 = vector.load %arg3[%c0_3, %c0_4] : memref<32x1xf32, #tpu.memory_space<vmem>>, vector<32x1xf32>
    %3 = arith.truncf %0 : vector<35x256xf32> to vector<35x256xbf16>
    %cst = arith.constant dense<0.000000e+00> : vector<32x256xf32>
    %4 = tpu.matmul %1, %3, %cst {dimension_numbers = #tpu.dot_dimension_numbers<[1], [0], [0], [1], [0, 0, 1, 1], [], []>} : vector<32x35xbf16>, vector<35x256xbf16>, vector<32x256xf32> -> vector<32x256xf32>
    %5 = vector.broadcast %2 : vector<32x1xf32> to vector<32x256xf32>
    %6 = arith.addf %4, %5 : vector<32x256xf32>
    %cst_5 = arith.constant 0.000000e+00 : f32
    %7 = vector.broadcast %cst_5 : f32 to vector<32x256xf32>
    %8 = arith.maximumf %6, %7 : vector<32x256xf32>
    %c0_6 = arith.constant 0 : index
    %c0_7 = arith.constant 0 : index
    %9 = vector.load %arg4[%c0_6, %c0_7] : memref<32x32xbf16, #tpu.memory_space<vmem>>, vector<32x32xbf16>
    %c0_8 = arith.constant 0 : index
    %c0_9 = arith.constant 0 : index
    %10 = vector.load %arg5[%c0_8, %c0_9] : memref<32x1xf32, #tpu.memory_space<vmem>>, vector<32x1xf32>
    %11 = arith.truncf %8 : vector<32x256xf32> to vector<32x256xbf16>
    %cst_10 = arith.constant dense<0.000000e+00> : vector<32x256xf32>
    %12 = tpu.matmul %9, %11, %cst_10 {dimension_numbers = #tpu.dot_dimension_numbers<[1], [0], [0], [1], [0, 0, 1, 1], [], []>} : vector<32x32xbf16>, vector<32x256xbf16>, vector<32x256xf32> -> vector<32x256xf32>
    %13 = vector.broadcast %10 : vector<32x1xf32> to vector<32x256xf32>
    %14 = arith.addf %12, %13 : vector<32x256xf32>
    %cst_11 = arith.constant 0.000000e+00 : f32
    %15 = vector.broadcast %cst_11 : f32 to vector<32x256xf32>
    %16 = arith.maximumf %14, %15 : vector<32x256xf32>
    %c0_12 = arith.constant 0 : index
    %c0_13 = arith.constant 0 : index
    %17 = vector.load %arg6[%c0_12, %c0_13] : memref<32x32xbf16, #tpu.memory_space<vmem>>, vector<32x32xbf16>
    %c0_14 = arith.constant 0 : index
    %c0_15 = arith.constant 0 : index
    %18 = vector.load %arg7[%c0_14, %c0_15] : memref<32x1xf32, #tpu.memory_space<vmem>>, vector<32x1xf32>
    %19 = arith.truncf %16 : vector<32x256xf32> to vector<32x256xbf16>
    %cst_16 = arith.constant dense<0.000000e+00> : vector<32x256xf32>
    %20 = tpu.matmul %17, %19, %cst_16 {dimension_numbers = #tpu.dot_dimension_numbers<[1], [0], [0], [1], [0, 0, 1, 1], [], []>} : vector<32x32xbf16>, vector<32x256xbf16>, vector<32x256xf32> -> vector<32x256xf32>
    %21 = vector.broadcast %18 : vector<32x1xf32> to vector<32x256xf32>
    %22 = arith.addf %20, %21 : vector<32x256xf32>
    %cst_17 = arith.constant 0.000000e+00 : f32
    %23 = vector.broadcast %cst_17 : f32 to vector<32x256xf32>
    %24 = arith.maximumf %22, %23 : vector<32x256xf32>
    %c0_18 = arith.constant 0 : index
    %c0_19 = arith.constant 0 : index
    %25 = vector.load %arg8[%c0_18, %c0_19] : memref<32x1xf32, #tpu.memory_space<vmem>>, vector<32x1xf32>
    %c0_20 = arith.constant 0 : index
    %c0_21 = arith.constant 0 : index
    %26 = vector.load %arg9[%c0_20, %c0_21] : memref<1x1xf32, #tpu.memory_space<vmem>>, vector<1x1xf32>
    %27 = vector.broadcast %25 : vector<32x1xf32> to vector<32x256xf32>
    %28 = arith.mulf %24, %27 : vector<32x256xf32>
    %cst_22 = arith.constant dense<0.000000e+00> : vector<256xf32>
    %29 = vector.multi_reduction <add>, %28, %cst_22 [0] : vector<32x256xf32> to vector<256xf32>
    %30 = vector.shape_cast %29 : vector<256xf32> to vector<1x256xf32>
    %31 = vector.broadcast %26 : vector<1x1xf32> to vector<1x256xf32>
    %32 = arith.addf %30, %31 : vector<1x256xf32>
    %c0_23 = arith.constant 0 : index
    %c0_24 = arith.constant 0 : index
    %33 = vector.load %arg10[%c0_23, %c0_24] : memref<1x256xf32, #tpu.memory_space<vmem>>, vector<1x256xf32>
    tpu.vector_store %arg10[%c0_23, %c0_24], %32 {strides = array<i32>} : memref<1x256xf32, #tpu.memory_space<vmem>>, vector<1x256xf32>,
    return
  }
  func.func @transform_0(%arg0: i32) -> (i32, i32) {
    %c0_i32 = arith.constant 0 : i32
    %c0_i32_0 = arith.constant 0 : i32
    return %c0_i32, %arg0 : i32, i32
  }
  func.func @transform_1(%arg0: i32) -> (i32, i32) {
    %c0_i32 = arith.constant 0 : i32
    %c0_i32_0 = arith.constant 0 : i32
    %c0_i32_1 = arith.constant 0 : i32
    return %c0_i32, %c0_i32_0 : i32, i32
  }
  func.func @transform_2(%arg0: i32) -> (i32, i32) {
    %c0_i32 = arith.constant 0 : i32
    %c0_i32_0 = arith.constant 0 : i32
    %c0_i32_1 = arith.constant 0 : i32
    return %c0_i32, %c0_i32_0 : i32, i32
  }
  func.func @transform_3(%arg0: i32) -> (i32, i32) {
    %c0_i32 = arith.constant 0 : i32
    %c0_i32_0 = arith.constant 0 : i32
    %c0_i32_1 = arith.constant 0 : i32
    return %c0_i32, %c0_i32_0 : i32, i32
  }
  func.func @transform_4(%arg0: i32) -> (i32, i32) {
    %c0_i32 = arith.constant 0 : i32
    %c0_i32_0 = arith.constant 0 : i32
    %c0_i32_1 = arith.constant 0 : i32
    return %c0_i32, %c0_i32_0 : i32, i32
  }
  func.func @transform_5(%arg0: i32) -> (i32, i32) {
    %c0_i32 = arith.constant 0 : i32
    %c0_i32_0 = arith.constant 0 : i32
    %c0_i32_1 = arith.constant 0 : i32
    return %c0_i32, %c0_i32_0 : i32, i32
  }
  func.func @transform_6(%arg0: i32) -> (i32, i32) {
    %c0_i32 = arith.constant 0 : i32
    %c0_i32_0 = arith.constant 0 : i32
    %c0_i32_1 = arith.constant 0 : i32
    return %c0_i32, %c0_i32_0 : i32, i32
  }
  func.func @transform_7(%arg0: i32) -> (i32, i32) {
    %c0_i32 = arith.constant 0 : i32
    %c0_i32_0 = arith.constant 0 : i32
    %c0_i32_1 = arith.constant 0 : i32
    return %c0_i32, %c0_i32_0 : i32, i32
  }
  func.func @transform_8(%arg0: i32) -> (i32, i32) {
    %c0_i32 = arith.constant 0 : i32
    %c0_i32_0 = arith.constant 0 : i32
    %c0_i32_1 = arith.constant 0 : i32
    return %c0_i32, %c0_i32_0 : i32, i32
  }
  func.func @transform_9(%arg0: i32) -> (i32, i32) {
    %c0_i32 = arith.constant 0 : i32
    %c0_i32_0 = arith.constant 0 : i32
    return %c0_i32, %arg0 : i32, i32
  }
}

</mosaic_0001>

<llo_original>
// kernel: mlp_forward.1
$region0: #{mlp_forward.1}
  #allocation0 [shape = 'u32[]', space=smem, size = 0x4, offset = 0x4, fixed_abs, tag = 'smem constant byte address 0x4 - core index']
  #allocation1 [shape = 'u32[144,128]{1,0:T(1,128)}', space=vmem, size = 0x12000, scoped, tag = 'internal scratch']
  #allocation2 [shape = 'f32[1,1]{1,0:T(1,128)S(1)}', space=vmem, size = 0x200, scoped, tag = 'scoped memory for mlp_forward.1']
  %s0 = inlined_call_operand.vmem [shape: f32[35,512], index: 0, kind: input, shape index: {}]
  %s1 = inlined_call_operand.vmem [shape: bf16[32,35], index: 1, kind: input, shape index: {}]
  %s2 = inlined_call_operand.vmem [shape: f32[32,1], index: 2, kind: input, shape index: {}]
  %s3 = inlined_call_operand.vmem [shape: bf16[32,32], index: 3, kind: input, shape index: {}]
  %s4 = inlined_call_operand.vmem [shape: f32[32,1], index: 4, kind: input, shape index: {}]
  %s5 = inlined_call_operand.vmem [shape: bf16[32,32], index: 5, kind: input, shape index: {}]
  %s6 = inlined_call_operand.vmem [shape: f32[32,1], index: 6, kind: input, shape index: {}]
  %s7 = inlined_call_operand.vmem [shape: f32[32,1], index: 7, kind: input, shape index: {}]
  %s8 = inlined_call_operand.<no memory space> [shape: f32[1,1], index: 8, kind: input, shape index: {}]
  %s9 = inlined_call_operand.hbm [shape: f32[1,512], index: 9, kind: output, shape index: {}]
  %s10 = sld [smem:[#allocation0]]
  $region92: #{mlp_forward.1} parent=0
    _
  %s12 = ssub.s32 1, %s10
  %s13 = scalar_select 0, %s12, %s10
  %v14 = vstv %s8
  %15 = vst [vmem:[#allocation2] sm:$0x1] %v14
  $region1: #{mlp_forward.1} parent=0
    #allocation3 [shape = 'u8[81920]{0}', space=vmem, size = 0x14000, scoped, tag = 'input window, operand 0']
    #allocation4 [shape = 'u8[2048]{0}', space=vmem, size = 0x800, scoped, tag = 'output window, operand 0']
    #allocation5 [shape = 's32[2]{0}', space=sflag, size = 0x8, scoped, tag = 'scoped memory for mlp_forward.1']
    %16 = vsyncpa [#allocation5], 0
    %s17 = scalar_lea.sflag [#allocation5], 1
    %18 = vsyncpa %s17, 0
    loop: start=0, step=1, limit=4
    $region2: #{mlp_forward.1} parent=1 // loop_pre_header
      _
    $region3: #{mlp_forward.1} parent=1 // loop_header
      %s20 = sphi 0, %s24
      %p21 = scmp.ge.s32.totalorder %s20, 4
      %s30 = sphi 0, %s32
      %s33 = sphi 0, %s30
      %s34 = sphi 0, %s33
      %s50 = sphi 0, %s34
      %s54 = sphi 0, %s54
      %s56 = sphi 0, %s54
      %s57 = sphi 0, %s56
      %s71 = sphi 0, %s57
      %s75 = sphi 0, %s75
      %s77 = sphi 0, %s75
      %s78 = sphi 0, %s77
      %s92 = sphi 0, %s78
      %s96 = sphi 0, %s96
      %s98 = sphi 0, %s96
      %s99 = sphi 0, %s98
      %s113 = sphi 0, %s99
      %s117 = sphi 0, %s117
      %s119 = sphi 0, %s117
      %s120 = sphi 0, %s119
      %s134 = sphi 0, %s120
      %s138 = sphi 0, %s138
      %s140 = sphi 0, %s138
      %s141 = sphi 0, %s140
      %s155 = sphi 0, %s141
      %s159 = sphi 0, %s159
      %s161 = sphi 0, %s159
      %s162 = sphi 0, %s161
      %s176 = sphi 0, %s162
      %s180 = sphi 0, %s180
      %s182 = sphi 0, %s180
      %s183 = sphi 0, %s182
      %s197 = sphi 0, %s183
      %s201 = sphi 0, %s201
      %s203 = sphi 0, %s201
      %s204 = sphi 0, %s203
      %s218 = sphi 0, %s204
      %s224 = sphi 0, %s226
      %s227 = sphi 0, %s224
      %s228 = sphi 0, %s227
      %s244 = sphi 0, %s228
    $region4: #{mlp_forward.1} parent=1 // loop_header_branch
      %23 = sbr.rel (%p21) target = $region8
    $region5: #{mlp_forward.1} parent=1 // loop_body
      %s25 = ssub.s32 %s20, 1
      %s26 = ssub.s32 %s20, 2
      %s27 = sadd.s32 %s20, 1
      %s28 = ssub.s32 %s20, %s27
      %p29 = scmp.eq.s32.totalorder %s28, 0
      %s31 = sadd.s32 %s30, 1
      %s32 = scalar_select %p29, %s30, %s31
      %p35 = pneg %p29
      %p36 = scmp.eq.s32.totalorder %s20, 1
      %p37 = por %p35, %p36
      %p38 = scmp.ne.s32.totalorder %s30, %s33
      %p39 = scmp.eq.s32.totalorder %s20, 0
      %p40 = por %p38, %p39
      %p41 = scmp.ne.s32.totalorder %s30, %s33
      %p42 = scmp.eq.s32.totalorder %s25, 1
      %p43 = por %p41, %p42
      %p44 = scmp.ne.s32.totalorder %s33, %s34
      %p45 = scmp.eq.s32.totalorder %s25, 0
      %p46 = por %p44, %p45
      %p47 = scmp.ne.s32.totalorder %s33, %s34
      %p48 = scmp.eq.s32.totalorder %s26, 1
      %p49 = por %p47, %p48
      %p51 = scmp.ne.s32.totalorder %s34, %s50
      %p52 = scmp.eq.s32.totalorder %s26, 0
      %p53 = por %p51, %p52
      %s55 = sadd.s32 %s54, 1
      %p58 = scmp.eq.s32.totalorder %s20, 1
      %p59 = scmp.ne.s32.totalorder %s54, %s56
      %p60 = scmp.eq.s32.totalorder %s20, 0
      %p61 = por %p59, %p60
      %p62 = scmp.ne.s32.totalorder %s54, %s56
      %p63 = scmp.eq.s32.totalorder %s25, 1
      %p64 = por %p62, %p63
      %p65 = scmp.ne.s32.totalorder %s56, %s57
      %p66 = scmp.eq.s32.totalorder %s25, 0
      %p67 = por %p65, %p66
      %p68 = scmp.ne.s32.totalorder %s56, %s57
      %p69 = scmp.eq.s32.totalorder %s26, 1
      %p70 = por %p68, %p69
      %p72 = scmp.ne.s32.totalorder %s57, %s71
      %p73 = scmp.eq.s32.totalorder %s26, 0
      %p74 = por %p72, %p73
      %s76 = sadd.s32 %s75, 1
      %p79 = scmp.eq.s32.totalorder %s20, 1
      %p80 = scmp.ne.s32.totalorder %s75, %s77
      %p81 = scmp.eq.s32.totalorder %s20, 0
      %p82 = por %p80, %p81
      %p83 = scmp.ne.s32.totalorder %s75, %s77
      %p84 = scmp.eq.s32.totalorder %s25, 1
      %p85 = por %p83, %p84
      %p86 = scmp.ne.s32.totalorder %s77, %s78
      %p87 = scmp.eq.s32.totalorder %s25, 0
      %p88 = por %p86, %p87
      %p89 = scmp.ne.s32.totalorder %s77, %s78
      %p90 = scmp.eq.s32.totalorder %s26, 1
      %p91 = por %p89, %p90
      %p93 = scmp.ne.s32.totalorder %s78, %s92
      %p94 = scmp.eq.s32.totalorder %s26, 0
      %p95 = por %p93, %p94
      %s97 = sadd.s32 %s96, 1
      %p100 = scmp.eq.s32.totalorder %s20, 1
      %p101 = scmp.ne.s32.totalorder %s96, %s98
      %p102 = scmp.eq.s32.totalorder %s20, 0
      %p103 = por %p101, %p102
      %p104 = scmp.ne.s32.totalorder %s96, %s98
      %p105 = scmp.eq.s32.totalorder %s25, 1
      %p106 = por %p104, %p105
      %p107 = scmp.ne.s32.totalorder %s98, %s99
      %p108 = scmp.eq.s32.totalorder %s25, 0
      %p109 = por %p107, %p108
      %p110 = scmp.ne.s32.totalorder %s98, %s99
      %p111 = scmp.eq.s32.totalorder %s26, 1
      %p112 = por %p110, %p111
      %p114 = scmp.ne.s32.totalorder %s99, %s113
      %p115 = scmp.eq.s32.totalorder %s26, 0
      %p116 = por %p114, %p115
      %s118 = sadd.s32 %s117, 1
      %p121 = scmp.eq.s32.totalorder %s20, 1
      %p122 = scmp.ne.s32.totalorder %s117, %s119
      %p123 = scmp.eq.s32.totalorder %s20, 0
      %p124 = por %p122, %p123
      %p125 = scmp.ne.s32.totalorder %s117, %s119
      %p126 = scmp.eq.s32.totalorder %s25, 1
      %p127 = por %p125, %p126
      %p128 = scmp.ne.s32.totalorder %s119, %s120
      %p129 = scmp.eq.s32.totalorder %s25, 0
      %p130 = por %p128, %p129
      %p131 = scmp.ne.s32.totalorder %s119, %s120
      %p132 = scmp.eq.s32.totalorder %s26, 1
      %p133 = por %p131, %p132
      %p135 = scmp.ne.s32.totalorder %s120, %s134
      %p136 = scmp.eq.s32.totalorder %s26, 0
      %p137 = por %p135, %p136
      %s139 = sadd.s32 %s138, 1
      %p142 = scmp.eq.s32.totalorder %s20, 1
      %p143 = scmp.ne.s32.totalorder %s138, %s140
      %p144 = scmp.eq.s32.totalorder %s20, 0
      %p145 = por %p143, %p144
      %p146 = scmp.ne.s32.totalorder %s138, %s140
      %p147 = scmp.eq.s32.totalorder %s25, 1
      %p148 = por %p146, %p147
      %p149 = scmp.ne.s32.totalorder %s140, %s141
      %p150 = scmp.eq.s32.totalorder %s25, 0
      %p151 = por %p149, %p150
      %p152 = scmp.ne.s32.totalorder %s140, %s141
      %p153 = scmp.eq.s32.totalorder %s26, 1
      %p154 = por %p152, %p153
      %p156 = scmp.ne.s32.totalorder %s141, %s155
      %p157 = scmp.eq.s32.totalorder %s26, 0
      %p158 = por %p156, %p157
      %s160 = sadd.s32 %s159, 1
      %p163 = scmp.eq.s32.totalorder %s20, 1
      %p164 = scmp.ne.s32.totalorder %s159, %s161
      %p165 = scmp.eq.s32.totalorder %s20, 0
      %p166 = por %p164, %p165
      %p167 = scmp.ne.s32.totalorder %s159, %s161
      %p168 = scmp.eq.s32.totalorder %s25, 1
      %p169 = por %p167, %p168
      %p170 = scmp.ne.s32.totalorder %s161, %s162
      %p171 = scmp.eq.s32.totalorder %s25, 0
      %p172 = por %p170, %p171
      %p173 = scmp.ne.s32.totalorder %s161, %s162
      %p174 = scmp.eq.s32.totalorder %s26, 1
      %p175 = por %p173, %p174
      %p177 = scmp.ne.s32.totalorder %s162, %s176
      %p178 = scmp.eq.s32.totalorder %s26, 0
      %p179 = por %p177, %p178
      %s181 = sadd.s32 %s180, 1
      %p184 = scmp.eq.s32.totalorder %s20, 1
      %p185 = scmp.ne.s32.totalorder %s180, %s182
      %p186 = scmp.eq.s32.totalorder %s20, 0
      %p187 = por %p185, %p186
      %p188 = scmp.ne.s32.totalorder %s180, %s182
      %p189 = scmp.eq.s32.totalorder %s25, 1
      %p190 = por %p188, %p189
      %p191 = scmp.ne.s32.totalorder %s182, %s183
      %p192 = scmp.eq.s32.totalorder %s25, 0
      %p193 = por %p191, %p192
      %p194 = scmp.ne.s32.totalorder %s182, %s183
      %p195 = scmp.eq.s32.totalorder %s26, 1
      %p196 = por %p194, %p195
      %p198 = scmp.ne.s32.totalorder %s183, %s197
      %p199 = scmp.eq.s32.totalorder %s26, 0
      %p200 = por %p198, %p199
      %s202 = sadd.s32 %s201, 1
      %p205 = scmp.eq.s32.totalorder %s20, 1
      %p206 = scmp.ne.s32.totalorder %s201, %s203
      %p207 = scmp.eq.s32.totalorder %s20, 0
      %p208 = por %p206, %p207
      %p209 = scmp.ne.s32.totalorder %s201, %s203
      %p210 = scmp.eq.s32.totalorder %s25, 1
      %p211 = por %p209, %p210
      %p212 = scmp.ne.s32.totalorder %s203, %s204
      %p213 = scmp.eq.s32.totalorder %s25, 0
      %p214 = por %p212, %p213
      %p215 = scmp.ne.s32.totalorder %s203, %s204
      %p216 = scmp.eq.s32.totalorder %s26, 1
      %p217 = por %p215, %p216
      %p219 = scmp.ne.s32.totalorder %s204, %s218
      %p220 = scmp.eq.s32.totalorder %s26, 0
      %p221 = por %p219, %p220
      %s222 = ssub.s32 %s20, %s27
      %p223 = scmp.eq.s32.totalorder %s222, 0
      %s225 = sadd.s32 %s224, 1
      %s226 = scalar_select %p223, %s224, %s225
      %p229 = pneg %p223
      %p230 = scmp.eq.s32.totalorder %s20, 1
      %p231 = por %p229, %p230
      %p232 = scmp.ne.s32.totalorder %s224, %s227
      %p233 = scmp.eq.s32.totalorder %s20, 0
      %p234 = por %p232, %p233
      %p235 = scmp.ne.s32.totalorder %s224, %s227
      %p236 = scmp.eq.s32.totalorder %s25, 1
      %p237 = por %p235, %p236
      %p238 = scmp.ne.s32.totalorder %s227, %s228
      %p239 = scmp.eq.s32.totalorder %s25, 0
      %p240 = por %p238, %p239
      %p241 = scmp.ne.s32.totalorder %s227, %s228
      %p242 = scmp.eq.s32.totalorder %s26, 1
      %p243 = por %p241, %p242
      %p245 = scmp.ne.s32.totalorder %s228, %s244
      %p246 = scmp.eq.s32.totalorder %s26, 0
      %p247 = por %p245, %p246
      %p248 = scmp.le.s32.totalorder 1, %s20
      %p249 = scmp.lt.s32.totalorder %s20, 3
      %p250 = pnand %p248, %p249
      %p251 = pneg %p250
      // Predicated region
      $region9: #{mlp_forward.1} parent=5 // pred_check
        _
      $region10: #{mlp_forward.1} parent=5 // pred_check_branch
        %253 = sbr.rel (%p250) target = $region12
      $region11: #{mlp_forward.1} parent=5 // pred_region
        %s254 = ssub.s32 %s20, 1
        // Predicated region
        $region13: #{mlp_forward.1} parent=11 // pred_check
          %p255 = pneg %p67
        $region14: #{mlp_forward.1} parent=11 // pred_check_branch
          %257 = sbr.rel (%p255) target = $region16
        $region15: #{mlp_forward.1} parent=11 // pred_region
          _
        $region16: #{mlp_forward.1} parent=11 // pred_fallthru
          _
        // Predicated region
        $region17: #{mlp_forward.1} parent=11 // pred_check
          %p258 = pneg %p88
        $region18: #{mlp_forward.1} parent=11 // pred_check_branch
          %260 = sbr.rel (%p258) target = $region20
        $region19: #{mlp_forward.1} parent=11 // pred_region
          _
        $region20: #{mlp_forward.1} parent=11 // pred_fallthru
          _
        // Predicated region
        $region21: #{mlp_forward.1} parent=11 // pred_check
          %p261 = pneg %p109
        $region22: #{mlp_forward.1} parent=11 // pred_check_branch
          %263 = sbr.rel (%p261) target = $region24
        $region23: #{mlp_forward.1} parent=11 // pred_region
          _
        $region24: #{mlp_forward.1} parent=11 // pred_fallthru
          _
        // Predicated region
        $region25: #{mlp_forward.1} parent=11 // pred_check
          %p264 = pneg %p130
        $region26: #{mlp_forward.1} parent=11 // pred_check_branch
          %266 = sbr.rel (%p264) target = $region28
        $region27: #{mlp_forward.1} parent=11 // pred_region
          _
        $region28: #{mlp_forward.1} parent=11 // pred_fallthru
          _
        // Predicated region
        $region29: #{mlp_forward.1} parent=11 // pred_check
          %p267 = pneg %p151
        $region30: #{mlp_forward.1} parent=11 // pred_check_branch
          %269 = sbr.rel (%p267) target = $region32
        $region31: #{mlp_forward.1} parent=11 // pred_region
          _
        $region32: #{mlp_forward.1} parent=11 // pred_fallthru
          _
        // Predicated region
        $region33: #{mlp_forward.1} parent=11 // pred_check
          %p270 = pneg %p172
        $region34: #{mlp_forward.1} parent=11 // pred_check_branch
          %272 = sbr.rel (%p270) target = $region36
        $region35: #{mlp_forward.1} parent=11 // pred_region
          _
        $region36: #{mlp_forward.1} parent=11 // pred_fallthru
          _
        // Predicated region
        $region37: #{mlp_forward.1} parent=11 // pred_check
          %p273 = pneg %p193
        $region38: #{mlp_forward.1} parent=11 // pred_check_branch
          %275 = sbr.rel (%p273) target = $region40
        $region39: #{mlp_forward.1} parent=11 // pred_region
          _
        $region40: #{mlp_forward.1} parent=11 // pred_fallthru
          _
        // Predicated region
        $region41: #{mlp_forward.1} parent=11 // pred_check
          %p276 = pneg %p214
        $region42: #{mlp_forward.1} parent=11 // pred_check_branch
          %278 = sbr.rel (%p276) target = $region44
        $region43: #{mlp_forward.1} parent=11 // pred_region
          _
        $region44: #{mlp_forward.1} parent=11 // pred_fallthru
          _
      $region12: #{mlp_forward.1} parent=5 // pred_fallthru
        _
      %p279 = scmp.lt.s32.totalorder %s20, 2
      // Predicated region
      $region45: #{mlp_forward.1} parent=5 // pred_check
        %p280 = pneg %p279
      $region46: #{mlp_forward.1} parent=5 // pred_check_branch
        %282 = sbr.rel (%p280) target = $region48
      $region47: #{mlp_forward.1} parent=5 // pred_region
        // Predicated region
        $region49: #{mlp_forward.1} parent=47 // pred_check
          %p283 = pneg %p40
        $region50: #{mlp_forward.1} parent=47 // pred_check_branch
          %285 = sbr.rel (%p283) target = $region52
        $region51: #{mlp_forward.1} parent=47 // pred_region
          %s286 = sand.u32 %s30, 1
          %s287 = sand.u32 %s30, 1
          %s288 = smul.addr %s287, 80
          %s289 = scalar_lea.vmem [#allocation3], %s288
          %s290 = smul.u32 2, %s20
          %s291 = smul.addr %s290, 8
          %s292 = scalar_lea.vmem %s0, %s291
          // Predicated region
          $region53: #{mlp_forward.1} parent=51 // pred_check
            _
          $region54: #{mlp_forward.1} parent=51 // pred_check_branch
            %294 = sbr.rel (0) target = $region56
          $region55: #{mlp_forward.1} parent=51 // pred_region
            // Predicated region
            $region57: #{mlp_forward.1} parent=55 // pred_check
              _
            $region58: #{mlp_forward.1} parent=55 // pred_check_branch
              %296 = sbr.rel (0) target = $region60
            $region59: #{mlp_forward.1} parent=55 // pred_region
              loop: start=0, step=1, limit=1
              $region61: #{mlp_forward.1} parent=59 // loop_pre_header
                _
              $region62: #{mlp_forward.1} parent=59 // loop_header
                %s298 = sphi 0, %s302
                %p299 = scmp.ge.s32.totalorder %s298, 1
                %s303 = sphi %s292, %s292
                %s304 = sphi %s289, %s289
              $region63: #{mlp_forward.1} parent=59 // loop_header_branch
                %301 = sbr.rel (%p299) target = $region67
              $region64: #{mlp_forward.1} parent=59 // loop_body
                %v305 = vld [vmem:[%s303] sm:$0xff]
                %306 = vst [vmem:[%s304] sm:$0xff] %v305
                %v307 = vld [vmem:[%s303 + $0x8] sm:$0xff]
                %308 = vst [vmem:[%s304 + $0x8] sm:$0xff] %v307
                %v309 = vld [vmem:[%s303 + $0x20] sm:$0xff]
                %310 = vst [vmem:[%s304 + $0x10] sm:$0xff] %v309
                %v311 = vld [vmem:[%s303 + $0x28] sm:$0xff]
                %312 = vst [vmem:[%s304 + $0x18] sm:$0xff] %v311
                %v313 = vld [vmem:[%s303 + $0x40] sm:$0xff]
                %314 = vst [vmem:[%s304 + $0x20] sm:$0xff] %v313
                %v315 = vld [vmem:[%s303 + $0x48] sm:$0xff]
                %316 = vst [vmem:[%s304 + $0x28] sm:$0xff] %v315
                %v317 = vld [vmem:[%s303 + $0x60] sm:$0xff]
                %318 = vst [vmem:[%s304 + $0x30] sm:$0xff] %v317
                %v319 = vld [vmem:[%s303 + $0x68] sm:$0xff]
                %320 = vst [vmem:[%s304 + $0x38] sm:$0xff] %v319
                %v321 = vld [vmem:[%s303 + $0x80] sm:$0xff]
                %322 = vst [vmem:[%s304 + $0x40] sm:$0xff] %v321
                %v323 = vld [vmem:[%s303 + $0x88] sm:$0xff]
                %324 = vst [vmem:[%s304 + $0x48] sm:$0xff] %v323
              $region65: #{mlp_forward.1} parent=59 // loop_footer
                %s302 = sadd.s32 1, %s298
              $region66: #{mlp_forward.1} parent=59 // loop_footer_branch
                %297 = sbr.rel target = $region62
              $region67: #{mlp_forward.1} parent=59 // loop_exit
                _
            $region60: #{mlp_forward.1} parent=55 // pred_fallthru
              _
            // Predicated region
            $region68: #{mlp_forward.1} parent=55 // pred_check
              _
            $region69: #{mlp_forward.1} parent=55 // pred_check_branch
              %326 = sbr.rel target = $region71
            $region70: #{mlp_forward.1} parent=55 // pred_region
              _
            $region71: #{mlp_forward.1} parent=55 // pred_fallthru
              _
          $region56: #{mlp_forward.1} parent=51 // pred_fallthru
            _
          %327 = vnop
        $region52: #{mlp_forward.1} parent=47 // pred_fallthru
          _
      $region48: #{mlp_forward.1} parent=5 // pred_fallthru
        _
      %p328 = scmp.le.s32.totalorder 1, %s20
      %p329 = scmp.lt.s32.totalorder %s20, 3
      %p330 = pnand %p328, %p329
      %p331 = pneg %p330
      // Predicated region
      $region72: #{mlp_forward.1} parent=5 // pred_check
        _
      $region73: #{mlp_forward.1} parent=5 // pred_check_branch
        %333 = sbr.rel (%p330) target = $region75
      $region74: #{mlp_forward.1} parent=5 // pred_region
        %s334 = ssub.s32 %s20, 1
        %s335 = sand.u32 %s33, 1
        %s336 = sand.u32 %s33, 1
        %s337 = smul.addr %s336, 80
        %s338 = scalar_lea.vmem [#allocation3], %s337
        // Predicated region
        $region76: #{mlp_forward.1} parent=74 // pred_check
          %p339 = pneg %p46
        $region77: #{mlp_forward.1} parent=74 // pred_check_branch
          %341 = sbr.rel (%p339) target = $region79
        $region78: #{mlp_forward.1} parent=74 // pred_region
          _
        $region79: #{mlp_forward.1} parent=74 // pred_fallthru
          _
        %s342 = sand.u32 %s33, 1
        %s343 = sand.u32 %s33, 1
        %s344 = smul.addr %s343, 80
        %s345 = scalar_lea.vmem [#allocation3], %s344
        %p346 = pneg %p46
        %p347 = pneg %p43
        %p348 = pneg %p67
        %p349 = pneg %p64
        %p350 = pneg %p88
        %p351 = pneg %p85
        %p352 = pneg %p109
        %p353 = pneg %p106
        %p354 = pneg %p130
        %p355 = pneg %p127
        %p356 = pneg %p151
        %p357 = pneg %p148
        %p358 = pneg %p172
        %p359 = pneg %p169
        %p360 = pneg %p193
        %p361 = pneg %p190
        %p362 = pneg %p214
        %p363 = pneg %p211
        %p364 = pneg %p240
        %p365 = pneg %p237
        %s366 = sand.u32 %s227, 1
        %s367 = scalar_lea.sflag [#allocation5], %s366
        %s368 = sand.u32 %s227, 1
        %s369 = smul.addr %s368, 2
        %s370 = scalar_lea.vmem [#allocation4], %s369
        %s371 = smul.u32 2, %s25
        %s372 = smul.u32 2, %s25
        %v374 = vld [vmem:[%s338] sm:$0xff]
        %v375 = vld [vmem:[%s338 + $0x8] sm:$0xff]
        %v376 = vld [vmem:[%s338 + $0x10] sm:$0xff]
        %v377 = vld [vmem:[%s338 + $0x18] sm:$0xff]
        %v378 = vld [vmem:[%s338 + $0x20] sm:$0xff]
        %v379 = vld [vmem:[%s338 + $0x28] sm:$0xff]
        %v380 = vld [vmem:[%s338 + $0x30] sm:$0xff]
        %v381 = vld [vmem:[%s338 + $0x38] sm:$0xff]
        %v382 = vld [vmem:[%s338 + $0x40] sm:$0x7]
        %v383 = vld [vmem:[%s338 + $0x48] sm:$0x7]
        %v384 = vld [vmem:[%s1] sm:$0xf]
        %v385 = vld [vmem:[%s1 + $0x4] sm:$0xf]
        %v386 = vld [vmem:[%s1 + $0x8] sm:$0xf]
        %v387 = vld [vmem:[%s1 + $0xc] sm:$0xf]
        %v388 = vld [vmem:[%s2] sm:$0xff]
        %v389 = vld [vmem:[%s2 + $0x8] sm:$0xff]
        %v390 = vld [vmem:[%s2 + $0x10] sm:$0xff]
        %v391 = vld [vmem:[%s2 + $0x18] sm:$0xff]
        %v392 = vpack.c.bf16 %v376, %v374
        %v393 = vpack.c.bf16 %v377, %v375
        %v394 = vpack.c.bf16 %v380, %v378
        %v395 = vpack.c.bf16 %v381, %v379
        %v396 = vpack.c.bf16 %v382, %v382
        %v397 = vpack.c.bf16 %v383, %v383
        %399 = vset.pattern.permute.xlu0 0
        %400 = vperm.xlu0 %399, %v388
        %v401 = vpop.permute.xlu0 %400
        %404 = vset.pattern.permute.xlu0 0
        %405 = vperm.xlu0 %404, %v389
        %v406 = vpop.permute.xlu0 %405
        %409 = vset.pattern.permute.xlu0 0
        %410 = vperm.xlu0 %409, %v390
        %v411 = vpop.permute.xlu0 %410
        %414 = vset.pattern.permute.xlu0 0
        %415 = vperm.xlu0 %414, %v391
        %v416 = vpop.permute.xlu0 %415
        %v422 = vunpack.c.l.b16 %v384
        %v423 = vunpack.c.l.b16 %v385
        %v424 = vunpack.c.l.b16 %v386
        %v425 = vunpack.c.l.b16 %v387
        %v426 = vpack.c.b16 %v423, %v422
        %v427 = vpack.c.b16 %v425, %v424
        %vm428 = vcmask 285696
        %v430 = vsel %vm428, %v426, 0
        %v433 = vsel %vm428, %v427, 0
        %vm435 = vcmask 1040384
        %vm436 = vcmask 1041408
        %v437 = vsel %vm435, 4294967295, 65535
        %v438 = vsel %vm436, %v437, 0
        %v440 = vand.u32 %v396, %v438
        %v443 = vand.u32 %v397, %v438
        %445 = vmatprep.subr.bf16.mxu0 %v393
        %446 = vmatpush1.bf16.msra.mxu0 %v392
        %447 = vmatprep.subr.bf16.mxu0 %v395
        %448 = vmatpush1.bf16.msra.mxu0 %v394
        %449 = vmatprep.subr.bf16.mxu0 %v443
        %450 = vmatpush1.bf16.msra.mxu0 %v440
        %451 = vmatprep.subr.bf16.mxu0 0
        %452 = vmatpush1.bf16.msra.mxu0 0
        %453 = vmatprep.subr.bf16.mxu0 0
        %454 = vmatpush1.bf16.msra.mxu0 0
        %455 = vmatprep.subr.bf16.mxu0 0
        %456 = vmatpush1.bf16.msra.mxu0 0
        %457 = vmatprep.subr.bf16.mxu0 0
        %458 = vmatpush1.bf16.msra.mxu0 0
        %459 = vmatprep.subr.bf16.mxu0 0
        %460 = vmatpush1.bf16.msra.mxu0 0
        %461 = vmatprep.subr.bf16.mxu0 0
        %462 = vmatpush1.bf16.msra.mxu0 0
        %463 = vmatprep.subr.bf16.mxu0 0
        %464 = vmatpush1.bf16.msra.mxu0 0
        %465 = vmatprep.subr.bf16.mxu0 0
        %466 = vmatpush1.bf16.msra.mxu0 0
        %467 = vmatprep.subr.bf16.mxu0 0
        %468 = vmatpush1.bf16.msra.mxu0 0
        %469 = vmatprep.subr.bf16.mxu0 0
        %470 = vmatpush1.bf16.msra.mxu0 0
        %471 = vmatprep.subr.bf16.mxu0 0
        %472 = vmatpush1.bf16.msra.mxu0 0
        %473 = vmatprep.subr.bf16.mxu0 0
        %474 = vmatpush1.bf16.msra.mxu0 0
        %475 = vmatprep.subr.bf16.mxu0 0
        %476 = vmatpush1.bf16.msra.mxu0 0
        %477 = vmatprep.mubr.bf16.mxu0 0
        %478 = vmatmul.mubr.bf16.gmra.mrb[0].mxu0 %v430
        %v479 = vpop.f32.mrb[0].mxu0
        %v480 = vadd.f32 %v401, %v479
        %v481 = vpop.f32.mrb[0].mxu0
        %v482 = vadd.f32 %v401, %v481
        %v483 = vpop.f32.mrb[0].mxu0
        %v484 = vadd.f32 %v406, %v483
        %v485 = vpop.f32.mrb[0].mxu0
        %v486 = vadd.f32 %v406, %v485
        %487 = vmatprep.mubr.bf16.mxu0 0
        %488 = vmatmul.mubr.bf16.gmra.mrb[0].mxu0 %v433
        %v489 = vpop.f32.mrb[0].mxu0
        %v490 = vadd.f32 %v411, %v489
        %v491 = vpop.f32.mrb[0].mxu0
        %v492 = vadd.f32 %v411, %v491
        %v493 = vpop.f32.mrb[0].mxu0
        %v494 = vadd.f32 %v416, %v493
        %v495 = vpop.f32.mrb[0].mxu0
        %v496 = vadd.f32 %v416, %v495
        %497 = vdwg.mxu0
        %v498 = vmax.f32 %v480, 0.0
        %v499 = vmax.f32 %v482, 0.0
        %v500 = vmax.f32 %v484, 0.0
        %v501 = vmax.f32 %v486, 0.0
        %v502 = vmax.f32 %v490, 0.0
        %v503 = vmax.f32 %v492, 0.0
        %v504 = vmax.f32 %v494, 0.0
        %v505 = vmax.f32 %v496, 0.0
        %v506 = vld [vmem:[%s3] sm:$0xf]
        %v507 = vld [vmem:[%s3 + $0x4] sm:$0xf]
        %v508 = vld [vmem:[%s3 + $0x8] sm:$0xf]
        %v509 = vld [vmem:[%s3 + $0xc] sm:$0xf]
        %v510 = vld [vmem:[%s4] sm:$0xff]
        %v511 = vld [vmem:[%s4 + $0x8] sm:$0xff]
        %v512 = vld [vmem:[%s4 + $0x10] sm:$0xff]
        %v513 = vld [vmem:[%s4 + $0x18] sm:$0xff]
        %v514 = vpack.c.bf16 %v500, %v498
        %v515 = vpack.c.bf16 %v501, %v499
        %v516 = vpack.c.bf16 %v504, %v502
        %v517 = vpack.c.bf16 %v505, %v503
        %519 = vset.pattern.permute.xlu0 0
        %520 = vperm.xlu0 %519, %v510
        %v521 = vpop.permute.xlu0 %520
        %524 = vset.pattern.permute.xlu0 0
        %525 = vperm.xlu0 %524, %v511
        %v526 = vpop.permute.xlu0 %525
        %529 = vset.pattern.permute.xlu0 0
        %530 = vperm.xlu0 %529, %v512
        %v531 = vpop.permute.xlu0 %530
        %534 = vset.pattern.permute.xlu0 0
        %535 = vperm.xlu0 %534, %v513
        %v536 = vpop.permute.xlu0 %535
        %v542 = vunpack.c.l.b16 %v506
        %v543 = vunpack.c.l.b16 %v507
        %v544 = vunpack.c.l.b16 %v508
        %v545 = vunpack.c.l.b16 %v509
        %v546 = vpack.c.b16 %v543, %v542
        %v547 = vpack.c.b16 %v545, %v544
        %vm548 = vcmask 261120
        %v550 = vsel %vm548, %v546, 0
        %v553 = vsel %vm548, %v547, 0
        %555 = vmatprep.subr.bf16.mxu0 %v515
        %556 = vmatpush1.bf16.msra.mxu0 %v514
        %557 = vmatprep.subr.bf16.mxu0 %v517
        %558 = vmatpush1.bf16.msra.mxu0 %v516
        %559 = vmatprep.subr.bf16.mxu0 0
        %560 = vmatpush1.bf16.msra.mxu0 0
        %561 = vmatprep.subr.bf16.mxu0 0
        %562 = vmatpush1.bf16.msra.mxu0 0
        %563 = vmatprep.subr.bf16.mxu0 0
        %564 = vmatpush1.bf16.msra.mxu0 0
        %565 = vmatprep.subr.bf16.mxu0 0
        %566 = vmatpush1.bf16.msra.mxu0 0
        %567 = vmatprep.subr.bf16.mxu0 0
        %568 = vmatpush1.bf16.msra.mxu0 0
        %569 = vmatprep.subr.bf16.mxu0 0
        %570 = vmatpush1.bf16.msra.mxu0 0
        %571 = vmatprep.subr.bf16.mxu0 0
        %572 = vmatpush1.bf16.msra.mxu0 0
        %573 = vmatprep.subr.bf16.mxu0 0
        %574 = vmatpush1.bf16.msra.mxu0 0
        %575 = vmatprep.subr.bf16.mxu0 0
        %576 = vmatpush1.bf16.msra.mxu0 0
        %577 = vmatprep.subr.bf16.mxu0 0
        %578 = vmatpush1.bf16.msra.mxu0 0
        %579 = vmatprep.subr.bf16.mxu0 0
        %580 = vmatpush1.bf16.msra.mxu0 0
        %581 = vmatprep.subr.bf16.mxu0 0
        %582 = vmatpush1.bf16.msra.mxu0 0
        %583 = vmatprep.subr.bf16.mxu0 0
        %584 = vmatpush1.bf16.msra.mxu0 0
        %585 = vmatprep.subr.bf16.mxu0 0
        %586 = vmatpush1.bf16.msra.mxu0 0
        %587 = vmatprep.mubr.bf16.mxu0 0
        %588 = vmatmul.mubr.bf16.gmra.mrb[0].mxu0 %v550
        %v589 = vpop.f32.mrb[0].mxu0
        %v590 = vadd.f32 %v521, %v589
        %v591 = vpop.f32.mrb[0].mxu0
        %v592 = vadd.f32 %v521, %v591
        %v593 = vpop.f32.mrb[0].mxu0
        %v594 = vadd.f32 %v526, %v593
        %v595 = vpop.f32.mrb[0].mxu0
        %v596 = vadd.f32 %v526, %v595
        %597 = vmatprep.mubr.bf16.mxu0 0
        %598 = vmatmul.mubr.bf16.gmra.mrb[0].mxu0 %v553
        %v599 = vpop.f32.mrb[0].mxu0
        %v600 = vadd.f32 %v531, %v599
        %v601 = vpop.f32.mrb[0].mxu0
        %v602 = vadd.f32 %v531, %v601
        %v603 = vpop.f32.mrb[0].mxu0
        %v604 = vadd.f32 %v536, %v603
        %v605 = vpop.f32.mrb[0].mxu0
        %v606 = vadd.f32 %v536, %v605
        %607 = vdwg.mxu0
        %v608 = vmax.f32 %v590, 0.0
        %v609 = vmax.f32 %v592, 0.0
        %v610 = vmax.f32 %v594, 0.0
        %v611 = vmax.f32 %v596, 0.0
        %v612 = vmax.f32 %v600, 0.0
        %v613 = vmax.f32 %v602, 0.0
        %v614 = vmax.f32 %v604, 0.0
        %v615 = vmax.f32 %v606, 0.0
        %v616 = vld [vmem:[%s5] sm:$0xf]
        %v617 = vld [vmem:[%s5 + $0x4] sm:$0xf]
        %v618 = vld [vmem:[%s5 + $0x8] sm:$0xf]
        %v619 = vld [vmem:[%s5 + $0xc] sm:$0xf]
        %v620 = vld [vmem:[%s6] sm:$0xff]
        %v621 = vld [vmem:[%s6 + $0x8] sm:$0xff]
        %v622 = vld [vmem:[%s6 + $0x10] sm:$0xff]
        %v623 = vld [vmem:[%s6 + $0x18] sm:$0xff]
        %v624 = vpack.c.bf16 %v610, %v608
        %v625 = vpack.c.bf16 %v611, %v609
        %v626 = vpack.c.bf16 %v614, %v612
        %v627 = vpack.c.bf16 %v615, %v613
        %629 = vset.pattern.permute.xlu0 0
        %630 = vperm.xlu0 %629, %v620
        %v631 = vpop.permute.xlu0 %630
        %634 = vset.pattern.permute.xlu0 0
        %635 = vperm.xlu0 %634, %v621
        %v636 = vpop.permute.xlu0 %635
        %639 = vset.pattern.permute.xlu0 0
        %640 = vperm.xlu0 %639, %v622
        %v641 = vpop.permute.xlu0 %640
        %644 = vset.pattern.permute.xlu0 0
        %645 = vperm.xlu0 %644, %v623
        %v646 = vpop.permute.xlu0 %645
        %v652 = vunpack.c.l.b16 %v616
        %v653 = vunpack.c.l.b16 %v617
        %v654 = vunpack.c.l.b16 %v618
        %v655 = vunpack.c.l.b16 %v619
        %v656 = vpack.c.b16 %v653, %v652
        %v657 = vpack.c.b16 %v655, %v654
        %v659 = vsel %vm548, %v656, 0
        %v662 = vsel %vm548, %v657, 0
        %664 = vmatprep.subr.bf16.mxu0 %v625
        %665 = vmatpush1.bf16.msra.mxu0 %v624
        %666 = vmatprep.subr.bf16.mxu0 %v627
        %667 = vmatpush1.bf16.msra.mxu0 %v626
        %668 = vmatprep.subr.bf16.mxu0 0
        %669 = vmatpush1.bf16.msra.mxu0 0
        %670 = vmatprep.subr.bf16.mxu0 0
        %671 = vmatpush1.bf16.msra.mxu0 0
        %672 = vmatprep.subr.bf16.mxu0 0
        %673 = vmatpush1.bf16.msra.mxu0 0
        %674 = vmatprep.subr.bf16.mxu0 0
        %675 = vmatpush1.bf16.msra.mxu0 0
        %676 = vmatprep.subr.bf16.mxu0 0
        %677 = vmatpush1.bf16.msra.mxu0 0
        %678 = vmatprep.subr.bf16.mxu0 0
        %679 = vmatpush1.bf16.msra.mxu0 0
        %680 = vmatprep.subr.bf16.mxu0 0
        %681 = vmatpush1.bf16.msra.mxu0 0
        %682 = vmatprep.subr.bf16.mxu0 0
        %683 = vmatpush1.bf16.msra.mxu0 0
        %684 = vmatprep.subr.bf16.mxu0 0
        %685 = vmatpush1.bf16.msra.mxu0 0
        %686 = vmatprep.subr.bf16.mxu0 0
        %687 = vmatpush1.bf16.msra.mxu0 0
        %688 = vmatprep.subr.bf16.mxu0 0
        %689 = vmatpush1.bf16.msra.mxu0 0
        %690 = vmatprep.subr.bf16.mxu0 0
        %691 = vmatpush1.bf16.msra.mxu0 0
        %692 = vmatprep.subr.bf16.mxu0 0
        %693 = vmatpush1.bf16.msra.mxu0 0
        %694 = vmatprep.subr.bf16.mxu0 0
        %695 = vmatpush1.bf16.msra.mxu0 0
        %696 = vmatprep.mubr.bf16.mxu0 0
        %697 = vmatmul.mubr.bf16.gmra.mrb[0].mxu0 %v659
        %v698 = vpop.f32.mrb[0].mxu0
        %v699 = vadd.f32 %v631, %v698
        %v700 = vpop.f32.mrb[0].mxu0
        %v701 = vadd.f32 %v631, %v700
        %v702 = vpop.f32.mrb[0].mxu0
        %v703 = vadd.f32 %v636, %v702
        %v704 = vpop.f32.mrb[0].mxu0
        %v705 = vadd.f32 %v636, %v704
        %706 = vmatprep.mubr.bf16.mxu0 0
        %707 = vmatmul.mubr.bf16.gmra.mrb[0].mxu0 %v662
        %v708 = vpop.f32.mrb[0].mxu0
        %v709 = vadd.f32 %v641, %v708
        %v710 = vpop.f32.mrb[0].mxu0
        %v711 = vadd.f32 %v641, %v710
        %v712 = vpop.f32.mrb[0].mxu0
        %v713 = vadd.f32 %v646, %v712
        %v714 = vpop.f32.mrb[0].mxu0
        %v715 = vadd.f32 %v646, %v714
        %716 = vdwg.mxu0
        %v717 = vmax.f32 %v699, 0.0
        %v718 = vmax.f32 %v701, 0.0
        %v719 = vmax.f32 %v703, 0.0
        %v720 = vmax.f32 %v705, 0.0
        %v721 = vmax.f32 %v709, 0.0
        %v722 = vmax.f32 %v711, 0.0
        %v723 = vmax.f32 %v713, 0.0
        %v724 = vmax.f32 %v715, 0.0
        %v725 = vld [vmem:[%s7] sm:$0xff]
        %v726 = vld [vmem:[%s7 + $0x8] sm:$0xff]
        %v727 = vld [vmem:[%s7 + $0x10] sm:$0xff]
        %v728 = vld [vmem:[%s7 + $0x18] sm:$0xff]
        %v729 = vld [vmem:[#allocation2] sm:$0x1]
        %731 = vset.pattern.permute.xlu0 0
        %732 = vperm.xlu0 %731, %v725
        %v733 = vpop.permute.xlu0 %732
        %736 = vset.pattern.permute.xlu0 0
        %737 = vperm.xlu0 %736, %v726
        %v738 = vpop.permute.xlu0 %737
        %741 = vset.pattern.permute.xlu0 0
        %742 = vperm.xlu0 %741, %v727
        %v743 = vpop.permute.xlu0 %742
        %746 = vset.pattern.permute.xlu0 0
        %747 = vperm.xlu0 %746, %v728
        %v748 = vpop.permute.xlu0 %747
        %v750 = vmul.f32 %v717, %v733
        %v751 = vmul.f32 %v718, %v733
        %v752 = vmul.f32 %v719, %v738
        %v753 = vmul.f32 %v720, %v738
        %v754 = vmul.f32 %v721, %v743
        %v755 = vmul.f32 %v722, %v743
        %v756 = vmul.f32 %v723, %v748
        %v757 = vmul.f32 %v724, %v748
        %v758 = vadd.f32 %v750, %v752
        %v759 = vadd.f32 %v758, %v754
        %v760 = vadd.f32 %v759, %v756
        %v761 = vrot.slane %v760, 4
        %v762 = vadd.f32 %v760, %v761
        %v763 = vrot.slane %v762, 2
        %v764 = vadd.f32 %v762, %v763
        %v765 = vrot.slane %v764, 1
        %v766 = vadd.f32 %v764, %v765
        %v767 = vadd.f32 %v751, %v753
        %v768 = vadd.f32 %v767, %v755
        %v769 = vadd.f32 %v768, %v757
        %v770 = vrot.slane %v769, 4
        %v771 = vadd.f32 %v769, %v770
        %v772 = vrot.slane %v771, 2
        %v773 = vadd.f32 %v771, %v772
        %v774 = vrot.slane %v773, 1
        %v775 = vadd.f32 %v773, %v774
        %777 = vset.pattern.permute.xlu0 0
        %778 = vperm.xlu0 %777, %v729
        %v779 = vpop.permute.xlu0 %778
        %v781 = vlaneseq
        %v782 = vshrl.u32 %v781, 7
        %v783 = vsub.s32 0, %v782
        %v784 = vrot.slane %v779, %v783
        %v785 = vadd.f32 %v766, %v784
        %v786 = vadd.f32 %v775, %v784
        %v789 = vcombine.low %v785, %v786
        %v791 = vunpack.c.l.s4 1966171168
        %v792 = vunpack.c.0.s8 %v791
        %v793 = vlaneseq
        %v794 = vshrl.u32 %v793, 7
        %v795 = vsub.s32 %v792, %v794
        %v796 = vrot.slane %v789, %v795
        %v798 = vunpack.c.l.s4 1966171168
        %v799 = vunpack.c.0.s8 %v798
        %v800 = vlaneseq
        %v801 = vshrl.u32 %v800, 7
        %v802 = vsub.s32 %v799, %v801
        %v803 = vrot.slane %v796, %v802
        %v805 = vlaneseq
        %vm806 = vcmp.ge.s32.totalorder %v805, 0
        %vm807 = vcmp.lt.s32.totalorder %v805, 256
        %vm808 = vmand %vm806, %vm807
        %809 = vst.msk [vmem:[%s370] sm:$0x3] %vm808, %v803
        %s810 = sand.u32 %s227, 1
        %s811 = scalar_lea.sflag [#allocation5], %s810
        %s812 = sand.u32 %s227, 1
        %s813 = smul.addr %s812, 2
        %s814 = scalar_lea.vmem [#allocation4], %s813
        // Predicated region
        $region80: #{mlp_forward.1} parent=74 // pred_check
          %p815 = pneg %p237
        $region81: #{mlp_forward.1} parent=74 // pred_check_branch
          %817 = sbr.rel (%p815) target = $region83
        $region82: #{mlp_forward.1} parent=74 // pred_region
          %s818 = smul.u32 2, %s25
          %s820 = ssub.s32 32, 32
          %821 = vsyncadd %s811, %s820
          %s822 = smul.addr %s818, 16
          %s823 = scalar_lea.hbm %s9, %s822
          %s825 = sshll.u32 %s814, 4
          %s826 = int_to_ptr.vmem [resolvable:$true] %s825
          %828 = dma.vmem_to_hbm [thread:$0]  %s826, 32, %s823, %s811
        $region83: #{mlp_forward.1} parent=74 // pred_fallthru
          _
      $region75: #{mlp_forward.1} parent=5 // pred_fallthru
        _
      %p829 = scmp.le.s32.totalorder 2, %s20
      // Predicated region
      $region84: #{mlp_forward.1} parent=5 // pred_check
        %p830 = pneg %p829
      $region85: #{mlp_forward.1} parent=5 // pred_check_branch
        %832 = sbr.rel (%p830) target = $region87
      $region86: #{mlp_forward.1} parent=5 // pred_region
        %s833 = ssub.s32 %s20, 2
        // Predicated region
        $region88: #{mlp_forward.1} parent=86 // pred_check
          %p834 = pneg %p243
        $region89: #{mlp_forward.1} parent=86 // pred_check_branch
          %836 = sbr.rel (%p834) target = $region91
        $region90: #{mlp_forward.1} parent=86 // pred_region
          %s837 = sand.u32 %s228, 1
          %s838 = scalar_lea.sflag [#allocation5], %s837
          %s839 = sand.u32 %s228, 1
          %s840 = smul.addr %s839, 2
          %s841 = scalar_lea.vmem [#allocation4], %s840
          %842 = dma.done %s838, 32
        $region91: #{mlp_forward.1} parent=86 // pred_fallthru
          _
      $region87: #{mlp_forward.1} parent=5 // pred_fallthru
        _
    $region6: #{mlp_forward.1} parent=1 // loop_footer
      %s24 = sadd.s32 1, %s20
    $region7: #{mlp_forward.1} parent=1 // loop_footer_branch
      %19 = sbr.rel target = $region3
    $region8: #{mlp_forward.1} parent=1 // loop_exit
      _
    %843 = vsyncpa [#allocation5], 1
    %s844 = scalar_lea.sflag [#allocation5], 1
    %845 = vsyncpa %s844, 1

</llo_original>
